<compile_context>
chip_gen: v7x
topology: tpu7x:2x2x1
jax: 0.10.0
libtpu: 0.0.40
codegen_flags: <defaults>
</compile_context>

<pallas_src>
import jax
import jax.numpy as jnp
from jax.experimental import pallas as pl
from jax.experimental.pallas import tpu as pltpu

EPS = 1e-5  # nn.InstanceNorm2d default


def adain_kernel(x_ref, g_ref, b_ref, o_ref):
    # x_ref : (R_BLK, HW) f32     g_ref / b_ref : (R_BLK, 1) f32
    x = x_ref[...]
    mean = jnp.mean(x, axis=-1, keepdims=True)                    # (R_BLK, 1)
    var = jnp.mean(jnp.square(x - mean), axis=-1, keepdims=True)  # biased var
    # Fold InstanceNorm + AdaIN affine into per-row scale/shift constants.
    scale = (1.0 + g_ref[...]) * jax.lax.rsqrt(var + EPS)         # EUP rsqrt
    shift = b_ref[...] - mean * scale
    o_ref[...] = x * scale + shift


def _pick_row_block(rows, hw, elem_bytes=4, budget_bytes=40 << 20):
    """Largest row tile (multiple of 8) whose double-buffered in+out footprint
    (~ 2 bufs x (in + out) x R_BLK x HW x 4B) fits the VMEM budget.  The 40 MiB
    budget is sized for v7x's 64 MiB per-TC VMEM; v5e/v6e have more headroom."""
    per_row_inflight = 4 * hw * elem_bytes
    max_rows = max(8, budget_bytes // per_row_inflight)
    if rows <= max_rows:
        return rows                       # single block along rows (full-dim ok)
    return max(8, (max_rows // 8) * 8)


def adain_forward(x, s, w, b):
    """x: (B, C, H, W) f32, s: (B, style_dim) f32,
       w: (2C, style_dim) f32 (torch Linear weight layout), b: (2C,) f32."""
    B, C, H, W = x.shape
    HW = H * W
    rows = B * C

    # Tiny fc done once outside the kernel; pass only per-row gamma/beta.
    h = (s @ w.T + b).astype(jnp.float32)             # (B, 2C)
    gamma = h[:, :C].reshape(rows, 1)                 # (B*C, 1)
    beta = h[:, C:].reshape(rows, 1)                  # (B*C, 1)

    # Flatten: spatial -> lanes, (batch, channel) -> sublanes.
    x2 = x.reshape(rows, HW).astype(jnp.float32)

    r_blk = _pick_row_block(rows, HW)
    grid = (pl.cdiv(rows, r_blk),)

    # Only raise the scoped VMEM limit when the in-flight footprint actually
    # exceeds the smallest default (16 MiB on v5e); 48 MiB stays under v7x's
    # 64 MiB physical VMEM.
    inflight_bytes = 4 * r_blk * HW * 4
    cp_kwargs = dict(dimension_semantics=("parallel",))
    if inflight_bytes > (16 << 20):
        cp_kwargs["vmem_limit_bytes"] = 48 << 20

    cost = pl.CostEstimate(
        flops=7 * rows * HW,
        transcendentals=rows,
        bytes_accessed=(2 * rows * HW + 4 * rows) * 4,
    )

    out2 = pl.pallas_call(
        adain_kernel,
        grid=grid,
        in_specs=[
            pl.BlockSpec((r_blk, HW), lambda r: (r, 0)),   # x rows tile
            pl.BlockSpec((r_blk, 1), lambda r: (r, 0)),    # gamma rows
            pl.BlockSpec((r_blk, 1), lambda r: (r, 0)),    # beta rows
        ],
        out_specs=pl.BlockSpec((r_blk, HW), lambda r: (r, 0)),
        out_shape=jax.ShapeDtypeStruct((rows, HW), jnp.float32),
        compiler_params=pltpu.CompilerParams(**cp_kwargs),
        cost_estimate=cost,
    )(x2, gamma, beta)

    return out2.reshape(B, C, H, W)


def reference_forward(x, s, w, b):
    """Pure-JAX replica of the PyTorch AdaIN forward."""
    B, C, H, W = x.shape
    h = s @ w.T + b                                      # (B, 2C)
    gamma = h[:, :C][:, :, None, None]
    beta = h[:, C:][:, :, None, None]
    mean = x.mean(axis=(2, 3), keepdims=True)
    var = ((x - mean) ** 2).mean(axis=(2, 3), keepdims=True)   # biased
    xn = (x - mean) / jnp.sqrt(var + EPS)
    return (1.0 + gamma) * xn + beta


if __name__ == "__main__":
    key = jax.random.PRNGKey(0)
    kx, ks, kw, kb = jax.random.split(key, 4)

    B, C, H, W = 2, 4, 16, 16
    STYLE_DIM = 64

    x = jax.random.normal(kx, (B, C, H, W), jnp.float32)
    s = jax.random.normal(ks, (B, STYLE_DIM), jnp.float32)
    w = 0.05 * jax.random.normal(kw, (2 * C, STYLE_DIM), jnp.float32)
    b = 0.05 * jax.random.normal(kb, (2 * C,), jnp.float32)

    out = jax.block_until_ready(adain_forward(x, s, w, b))
    ref = jax.block_until_ready(reference_forward(x, s, w, b))

    assert out.shape == (B, C, H, W)
    assert jnp.allclose(out, ref, rtol=1e-3, atol=1e-3), "mismatch vs JAX reference"
    print("KERNEL_OK")
</pallas_src>

<mosaic_0001>
module attributes {stable_mosaic.version = 11 : i64} {
  func.func @adain_kernel(%arg0: i32, %arg1: memref<8x256xf32, #tpu.memory_space<vmem>>, %arg2: memref<8x1xf32, #tpu.memory_space<vmem>>, %arg3: memref<8x1xf32, #tpu.memory_space<vmem>>, %arg4: memref<8x256xf32, #tpu.memory_space<vmem>>) attributes {dimension_semantics = [#tpu.dimension_semantics<parallel>], iteration_bounds = array<i64: 1>, scalar_prefetch = 0 : i64, scratch_operands = 0 : i64, tpu.core_type = #tpu.core_type<tc>, window_params = [{transform_indices = @transform_0, window_bounds = array<i64: 8, 256>}, {transform_indices = @transform_1, window_bounds = array<i64: 8, 1>}, {transform_indices = @transform_2, window_bounds = array<i64: 8, 1>}, {transform_indices = @transform_3, window_bounds = array<i64: 8, 256>}]} {
    %c0 = arith.constant 0 : index
    %c0_0 = arith.constant 0 : index
    %0 = vector.load %arg1[%c0, %c0_0] : memref<8x256xf32, #tpu.memory_space<vmem>>, vector<8x256xf32>
    %cst = arith.constant dense<0.000000e+00> : vector<8xf32>
    %1 = vector.multi_reduction <add>, %0, %cst [1] : vector<8x256xf32> to vector<8xf32>
    %2 = vector.shape_cast %1 : vector<8xf32> to vector<8x1xf32>
    %cst_1 = arith.constant 2.560000e+02 : f32
    %3 = vector.broadcast %cst_1 : f32 to vector<8x1xf32>
    %4 = arith.divf %2, %3 : vector<8x1xf32>
    %5 = vector.broadcast %4 : vector<8x1xf32> to vector<8x256xf32>
    %6 = arith.subf %0, %5 : vector<8x256xf32>
    %7 = arith.mulf %6, %6 : vector<8x256xf32>
    %cst_2 = arith.constant dense<0.000000e+00> : vector<8xf32>
    %8 = vector.multi_reduction <add>, %7, %cst_2 [1] : vector<8x256xf32> to vector<8xf32>
    %9 = vector.shape_cast %8 : vector<8xf32> to vector<8x1xf32>
    %cst_3 = arith.constant 2.560000e+02 : f32
    %10 = vector.broadcast %cst_3 : f32 to vector<8x1xf32>
    %11 = arith.divf %9, %10 : vector<8x1xf32>
    %c0_4 = arith.constant 0 : index
    %c0_5 = arith.constant 0 : index
    %12 = vector.load %arg2[%c0_4, %c0_5] : memref<8x1xf32, #tpu.memory_space<vmem>>, vector<8x1xf32>
    %cst_6 = arith.constant 1.000000e+00 : f32
    %13 = vector.broadcast %cst_6 : f32 to vector<8x1xf32>
    %14 = arith.addf %13, %12 : vector<8x1xf32>
    %cst_7 = arith.constant 9.99999974E-6 : f32
    %15 = vector.broadcast %cst_7 : f32 to vector<8x1xf32>
    %16 = arith.addf %11, %15 : vector<8x1xf32>
    %17 = math.rsqrt %16 : vector<8x1xf32>
    %18 = arith.mulf %14, %17 : vector<8x1xf32>
    %c0_8 = arith.constant 0 : index
    %c0_9 = arith.constant 0 : index
    %19 = vector.load %arg3[%c0_8, %c0_9] : memref<8x1xf32, #tpu.memory_space<vmem>>, vector<8x1xf32>
    %20 = arith.mulf %4, %18 : vector<8x1xf32>
    %21 = arith.subf %19, %20 : vector<8x1xf32>
    %22 = vector.broadcast %18 : vector<8x1xf32> to vector<8x256xf32>
    %23 = arith.mulf %0, %22 : vector<8x256xf32>
    %24 = vector.broadcast %21 : vector<8x1xf32> to vector<8x256xf32>
    %25 = arith.addf %23, %24 : vector<8x256xf32>
    %c0_10 = arith.constant 0 : index
    %c0_11 = arith.constant 0 : index
    %26 = vector.load %arg4[%c0_10, %c0_11] : memref<8x256xf32, #tpu.memory_space<vmem>>, vector<8x256xf32>
    tpu.vector_store %arg4[%c0_10, %c0_11], %25 {strides = array<i32>} : memref<8x256xf32, #tpu.memory_space<vmem>>, vector<8x256xf32>,
    return
  }
  func.func @transform_0(%arg0: i32) -> (i32, i32) {
    %c0_i32 = arith.constant 0 : i32
    %c0_i32_0 = arith.constant 0 : i32
    return %arg0, %c0_i32 : i32, i32
  }
  func.func @transform_1(%arg0: i32) -> (i32, i32) {
    %c0_i32 = arith.constant 0 : i32
    %c0_i32_0 = arith.constant 0 : i32
    return %arg0, %c0_i32 : i32, i32
  }
  func.func @transform_2(%arg0: i32) -> (i32, i32) {
    %c0_i32 = arith.constant 0 : i32
    %c0_i32_0 = arith.constant 0 : i32
    return %arg0, %c0_i32 : i32, i32
  }
  func.func @transform_3(%arg0: i32) -> (i32, i32) {
    %c0_i32 = arith.constant 0 : i32
    %c0_i32_0 = arith.constant 0 : i32
    return %arg0, %c0_i32 : i32, i32
  }
}

</mosaic_0001>

<llo_original>
// kernel: tpu_custom_call.1
$region0: #{tpu_custom_call.1}
  #allocation0 [shape = 'u32[]', space=smem, size = 0x4, offset = 0x4, fixed_abs, tag = 'smem constant byte address 0x4 - core index']
  #allocation1 [shape = 'u32[144,128]{1,0:T(1,128)}', space=vmem, size = 0x12000, scoped, tag = 'internal scratch']
  %s0 = inlined_call_operand.vmem [shape: f32[8,256], index: 0, kind: input, shape index: {}]
  %s1 = inlined_call_operand.vmem [shape: f32[8,1], index: 1, kind: input, shape index: {}]
  %s2 = inlined_call_operand.vmem [shape: f32[8,1], index: 2, kind: input, shape index: {}]
  %s3 = inlined_call_operand.hbm [shape: f32[8,256], index: 3, kind: output, shape index: {}]
  %s4 = sld [smem:[#allocation0]]
  $region22: #{tpu_custom_call.1} parent=0
    _
  %s6 = ssub.s32 1, %s4
  %s7 = scalar_select 0, %s6, %s4
  $region1: #{tpu_custom_call.1} parent=0
    #allocation2 [shape = 'u8[8192]{0}', space=vmem, size = 0x2000, scoped, tag = 'output window, operand 0, single buffered']
    #allocation3 [shape = 's32[1]{0}', space=sflag, size = 0x4, scoped, tag = 'scoped memory for tpu_custom_call.1']
    %8 = vsyncpa [#allocation3], 0
    // Predicated region
    $region2: #{tpu_custom_call.1} parent=1 // pred_check
      _
    $region3: #{tpu_custom_call.1} parent=1 // pred_check_branch
      %10 = sbr.rel (0) target = $region5
    $region4: #{tpu_custom_call.1} parent=1 // pred_region
      _
    $region5: #{tpu_custom_call.1} parent=1 // pred_fallthru
      _
    // Predicated region
    $region6: #{tpu_custom_call.1} parent=1 // pred_check
      _
    $region7: #{tpu_custom_call.1} parent=1 // pred_check_branch
      %12 = sbr.rel (0) target = $region9
    $region8: #{tpu_custom_call.1} parent=1 // pred_region
      _
    $region9: #{tpu_custom_call.1} parent=1 // pred_fallthru
      _
    // Predicated region
    $region10: #{tpu_custom_call.1} parent=1 // pred_check
      _
    $region11: #{tpu_custom_call.1} parent=1 // pred_check_branch
      %14 = sbr.rel (0) target = $region13
    $region12: #{tpu_custom_call.1} parent=1 // pred_region
      _
    $region13: #{tpu_custom_call.1} parent=1 // pred_fallthru
      _
    %v15 = vld [vmem:[%s0] sm:$0xff]
    %v16 = vld [vmem:[%s0 + $0x8] sm:$0xff]
    %v17 = vadd.f32 %v15, %v16
    %18 = vadd.xlane.f32.xlu0 %v17
    %v19 = vpop.xlane.xlu0 %18
    %v20 = vrcp.pop 256.0
    %v21 = vmul.f32 %v19, %v20
    %v22 = vsub.f32 %v15, %v21
    %v23 = vsub.f32 %v16, %v21
    %v24 = vmul.f32 %v22, %v22
    %v25 = vmul.f32 %v23, %v23
    %v26 = vadd.f32 %v24, %v25
    %27 = vadd.xlane.f32.xlu0 %v26
    %v28 = vpop.xlane.xlu0 %27
    %v29 = vmul.f32 %v28, %v20
    %v30 = vld [vmem:[%s1] sm:$0xff]
    %v31 = vadd.f32 %v30, 1.0
    %v32 = vadd.f32 %v29, 1e-05
    %v33 = vrsqrt.pop %v32
    %v34 = vmul.f32 %v31, %v33
    %v35 = vld [vmem:[%s2] sm:$0xff]
    %v36 = vmul.f32 %v21, %v34
    %v37 = vsub.f32 %v35, %v36
    %39 = vset.pattern.permute.xlu0 0
    %40 = vperm.xlu0 %39, %v34
    %v41 = vpop.permute.xlu0 %40
    %v43 = vmul.f32 %v15, %v41
    %v44 = vmul.f32 %v16, %v41
    %46 = vset.pattern.permute.xlu0 0
    %47 = vperm.xlu0 %46, %v37
    %v48 = vpop.permute.xlu0 %47
    %v50 = vadd.f32 %v43, %v48
    %v51 = vadd.f32 %v44, %v48
    %52 = vst [vmem:[#allocation2] sm:$0xff] %v50
    %53 = vst [vmem:[#allocation2 + $0x8] sm:$0xff] %v51
    // Predicated region
    $region14: #{tpu_custom_call.1} parent=1 // pred_check
      _
    $region15: #{tpu_custom_call.1} parent=1 // pred_check_branch
      %55 = sbr.rel (0) target = $region17
    $region16: #{tpu_custom_call.1} parent=1 // pred_region
      %s57 = ssub.s32 256, 256
      %58 = vsyncadd [#allocation3], %s57
      %s60 = sshll.u32 [#allocation2], 4
      %s61 = int_to_ptr.vmem [resolvable:$true] %s60
      %63 = dma.vmem_to_hbm [thread:$0]  %s61, 256, %s3, [#allocation3]
    $region17: #{tpu_custom_call.1} parent=1 // pred_fallthru
      _
    // Predicated region
    $region18: #{tpu_custom_call.1} parent=1 // pred_check
      _
    $region19: #{tpu_custom_call.1} parent=1 // pred_check_branch
      %65 = sbr.rel (0) target = $region21
    $region20: #{tpu_custom_call.1} parent=1 // pred_region
      %66 = dma.done [#allocation3], 256
    $region21: #{tpu_custom_call.1} parent=1 // pred_fallthru
      _
    %67 = vsyncpa [#allocation3], 1

</llo_original>
